<compile_context>
chip_gen: v7x
topology: tpu7x:2x2x1
jax: 0.10.0
libtpu: 0.0.40
codegen_flags: <defaults>
</compile_context>

<pallas_src>
import jax
import jax.numpy as jnp
from jax.experimental import pallas as pl
from jax.experimental.pallas import tpu as pltpu

_MIB = 1024 * 1024


def _linear_kernel(x_ref, w_ref, b_ref, o_ref, acc_ref):
    """One (i, j, k) grid step of  out = x @ w + b  with w already (K, N).

    x_ref:   (tm, tk)  activation block
    w_ref:   (tk, tn)  weight block in (in_dim, out_dim) layout -> standard
                       MXU contraction, no per-step transpose
    b_ref:   (1,  tn)  bias block
    o_ref:   (tm, tn)  output block (written on the last K step only)
    acc_ref: (tm, tn)  float32 VMEM accumulator
    """
    k = pl.program_id(2)

    # Fold the bias add into the accumulator init (no epilogue VPU pass).
    @pl.when(k == 0)
    def _init():
        acc_ref[...] = jnp.broadcast_to(
            b_ref[...].astype(jnp.float32), acc_ref.shape)

    acc_ref[...] += jnp.dot(x_ref[...], w_ref[...],
                            preferred_element_type=jnp.float32)

    @pl.when(k == pl.num_programs(2) - 1)
    def _store():
        o_ref[...] = acc_ref[...].astype(o_ref.dtype)


def _vmem_capacity_bytes():
    """Per-TensorCore VMEM capacity; conservative fallback = v7x (64 MiB)."""
    try:
        info = pltpu.get_tpu_info()
        cap = int(getattr(info, "vmem_capacity_bytes", 0) or 0)
        if cap > 0:
            return cap
    except Exception:
        pass
    return 64 * _MIB


def _round_down(v, align):
    return max(align, (v // align) * align)


def _largest_aligned_divisor(dim, cap, align=128):
    """Largest multiple of `align` that divides `dim` and is <= cap (or None)."""
    best = None
    for d in range(align, min(cap, dim) + 1, align):
        if dim % d == 0:
            best = d
    return best


def _plan(M, N, K, in_bytes, out_bytes, vmem_cap,
          tm_req=None, tn_req=None, tk_req=None, sublane=8):
    """Pick (tm, tn, tk), padded N/K and a vmem limit for this generation.

    Live-VMEM model (double-buffered in/out blocks + f32 accumulator):
        2*(tm*tk + tk*tn + tn)*in_bytes + 2*tm*tn*out_bytes + tm*tn*4
    kept under min(0.80*capacity, 44 MiB): big tiles on 128 MiB parts
    (v5e/v6e), safely under ~48 MiB live on v7x's 64 MiB/TC.
    """
    budget = int(min(0.80 * vmem_cap, 44 * _MIB))

    # Lane-dense output: pad ragged N to a multiple of 128 (unmasked `vst`
    # beats masked partial stores ~4.5x).  For very large ragged N the one-off
    # weight-pad copy can outweigh the store win, so leave those ragged.
    if N < 128 or (N % 128 != 0 and N <= 4096):
        N_pad = pl.cdiv(N, 128) * 128
    else:
        N_pad = N

    small_m = M <= 512  # weight-streaming regime: favor big K chunks
    tm_cap = 512 if tm_req is None else max(sublane, int(tm_req))
    tn_cap = 1024 if tn_req is None else max(128, int(tn_req))
    tk_cap = (2048 if small_m else 1024) if tk_req is None else max(128, int(tk_req))

    def clamp(tm_c, tn_c, tk_c):
        tm_ = M if M <= tm_c else _round_down(min(tm_c, M), sublane)
        tn_ = N_pad if N_pad <= tn_c else _round_down(min(tn_c, N_pad), 128)
        tk_ = K if K <= tk_c else _round_down(min(tk_c, K), 128)
        return tm_, tn_, tk_

    def live(tm_, tn_, tk_):
        return (2 * (tm_ * tk_ + tk_ * tn_ + tn_) * in_bytes
                + 2 * tm_ * tn_ * out_bytes + tm_ * tn_ * 4)

    # Shrink caps until the double-buffered working set fits the budget
    # (only triggers for oversized user-requested tiles).
    while True:
        tm_, tn_, tk_ = clamp(tm_cap, tn_cap, tk_cap)
        if live(tm_, tn_, tk_) <= budget:
            break
        if tk_ >= tn_ and tk_ > 256:
            tk_cap = max(128, tk_ // 2)
        elif tn_ > 256:
            tn_cap = max(128, tn_ // 2)
        elif tm_ > sublane:
            tm_cap = max(sublane, tm_ // 2)
        else:
            break

    # ---- tm
    tm = M if M <= tm_cap else _round_down(min(tm_cap, M), sublane)

    # ---- tn: a multiple of 128 that divides N_pad when possible, so every j
    # block is full and every output store is an unmasked vst.
    if N_pad <= tn_cap:
        tn = N_pad
    else:
        tn = _largest_aligned_divisor(N_pad, tn_cap) or _round_down(tn_cap, 128)

    # v7x has 2 TensorCores; the (parallel) i/j grid axes shard across them.
    # With a single i block, make sure there are >= 2 j blocks so the second
    # core is not idle (a harmless extra grid step on 1-core chips).
    if M <= tm and tn == N_pad and N_pad >= 256:
        half = _largest_aligned_divisor(N_pad, N_pad // 2)
        if half is not None:
            tn = half

    # ---- tk: prefer a multiple of 128 that divides K so the wrapper never
    # zero-pads K (a pad is a full, un-overlapped HBM pass over x and w).
    if K <= tk_cap:
        tk, K_pad = K, K
    else:
        div = _largest_aligned_divisor(K, tk_cap)
        if div is not None:
            tk, K_pad = div, K
        else:
            tk = _round_down(tk_cap, 128)
            K_pad = pl.cdiv(K, tk) * tk

    vmem_limit = int(min(0.85 * vmem_cap, max(2 * live(tm, tn, tk), 32 * _MIB)))
    return tm, tn, tk, N_pad, K_pad, vmem_limit


def linear_forward(x, weights, bias, *, tm=None, tn=None, tk=None,
                   use_bf16_operands=False, weights_are_kn=False):
    """y = x @ weights.T + bias (PyTorch Linear forward) as a Pallas TPU kernel.

    x:       (M, K) activations
    weights: (N, K) PyTorch (out_dim, in_dim) layout, or (K, N) if
             `weights_are_kn=True` (preferred for static weights: skips even
             the one-time wrapper transpose).
    bias:    (N,)
    use_bf16_operands: cast MXU operands to bf16 (accumulation stays f32).
             Native-rate win on v6e/v7x and an even larger relative win on
             v5e (whose f32 matmul is emulated via multiple bf16 passes).
             For repeated calls, store the weights in bf16 ahead of time so
             the per-call cast (an extra HBM pass) disappears.
    """
    M, K = x.shape
    if weights_are_kn:
        K2, N = weights.shape
        w_kn = weights
    else:
        N, K2 = weights.shape
        # One-time (N, K) -> (K, N) layout fix in HBM, amortized over every
        # M/N tile; avoids a per-grid-step weight-tile transpose inside the
        # kernel (which would contend with vmatmul on the vector-extended slot).
        w_kn = weights.T
    assert K == K2, "in_dim mismatch"
    out_dtype = x.dtype

    if use_bf16_operands:
        if x.dtype != jnp.bfloat16:
            x = x.astype(jnp.bfloat16)
        if w_kn.dtype != jnp.bfloat16:
            w_kn = w_kn.astype(jnp.bfloat16)

    in_bytes = jnp.dtype(x.dtype).itemsize
    out_bytes = jnp.dtype(out_dtype).itemsize
    sublane = 16 if x.dtype == jnp.bfloat16 else 8

    tm_, tn_, tk_, N_pad, K_pad, vmem_limit = _plan(
        M, N, K, in_bytes, out_bytes, _vmem_capacity_bytes(),
        tm_req=tm, tn_req=tn, tk_req=tk, sublane=sublane)

    if N_pad != N:
        w_kn = jnp.pad(w_kn, ((0, 0), (0, N_pad - N)))
        bias = jnp.pad(bias, (0, N_pad - N))
    if K_pad != K:
        # Rare fallback (no 128-multiple <= tk divides K): zero-pad so the
        # extra K blocks contribute exactly 0 to the accumulator.
        x = jnp.pad(x, ((0, 0), (0, K_pad - K)))
        w_kn = jnp.pad(w_kn, ((0, K_pad - K), (0, 0)))

    b2d = bias.reshape(1, N_pad)
    grid = (pl.cdiv(M, tm_), pl.cdiv(N_pad, tn_), pl.cdiv(K_pad, tk_))

    # Advisory cost hint; bytes include tiling re-reads of x (per j block)
    # and weights (per i block).
    cost = pl.CostEstimate(
        flops=2 * M * N_pad * K_pad,
        transcendentals=0,
        bytes_accessed=((grid[1] * M * K_pad + grid[0] * K_pad * N_pad + N_pad)
                        * in_bytes + M * N_pad * out_bytes),
    )

    out = pl.pallas_call(
        _linear_kernel,
        out_shape=jax.ShapeDtypeStruct((M, N_pad), out_dtype),
        grid_spec=pltpu.PrefetchScalarGridSpec(
            num_scalar_prefetch=0,
            grid=grid,
            in_specs=[
                pl.BlockSpec((tm_, tk_), lambda i, j, k: (i, k)),   # x (M, K)
                pl.BlockSpec((tk_, tn_), lambda i, j, k: (k, j)),   # w (K, N)
                pl.BlockSpec((1, tn_), lambda i, j, k: (0, j)),     # bias
            ],
            out_specs=pl.BlockSpec((tm_, tn_), lambda i, j, k: (i, j)),
            scratch_shapes=[pltpu.VMEM((tm_, tn_), jnp.float32)],
        ),
        compiler_params=pltpu.CompilerParams(
            dimension_semantics=("parallel", "parallel", "arbitrary"),
            vmem_limit_bytes=vmem_limit,
        ),
        cost_estimate=cost,
    )(x, w_kn, b2d)

    if N_pad != N:
        out = out[:, :N]
    return out


if __name__ == "__main__":
    # ---- Test 1: module-sized small shapes (batch=8, in_dim=32, out_dim=64),
    # exercises the N < 128 lane-dense pad and full-K single-step path.
    in_dim, out_dim, batch = 32, 64, 8
    kx, kw, kb = jax.random.split(jax.random.PRNGKey(0), 3)
    x = jax.random.normal(kx, (batch, in_dim), dtype=jnp.float32)
    weights = jax.random.normal(kw, (out_dim, in_dim), dtype=jnp.float32)
    bias = jax.random.normal(kb, (out_dim,), dtype=jnp.float32)

    out = jax.block_until_ready(linear_forward(x, weights, bias))
    ref = x @ weights.T + bias
    assert out.shape == (batch, out_dim)
    assert jnp.allclose(out, ref, atol=1e-5, rtol=1e-5), "test 1 mismatch"

    # ---- Test 2: medium shape with multiple j blocks (2-TC split path) and a
    # K that is handled without any wrapper pad.
    M2, K2_, N2 = 128, 1280, 384
    k2x, k2w, k2b = jax.random.split(jax.random.PRNGKey(1), 3)
    x2 = jax.random.normal(k2x, (M2, K2_), dtype=jnp.float32)
    w2 = jax.random.normal(k2w, (N2, K2_), dtype=jnp.float32)
    b2 = jax.random.normal(k2b, (N2,), dtype=jnp.float32)

    out2 = jax.block_until_ready(linear_forward(x2, w2, b2))
    ref2 = x2 @ w2.T + b2
    rel2 = jnp.max(jnp.abs(out2 - ref2)) / jnp.max(jnp.abs(ref2))
    assert out2.shape == (M2, N2)
    assert rel2 < 1e-3, f"test 2 mismatch, rel_err={rel2}"

    # ---- Test 3: K-tiled accumulator path (K > tk cap, dividing tk -> no pad).
    M3, K3, N3 = 64, 2560, 256
    k3x, k3w, k3b = jax.random.split(jax.random.PRNGKey(2), 3)
    x3 = jax.random.normal(k3x, (M3, K3), dtype=jnp.float32)
    w3 = jax.random.normal(k3w, (N3, K3), dtype=jnp.float32)
    b3 = jax.random.normal(k3b, (N3,), dtype=jnp.float32)

    out3 = jax.block_until_ready(linear_forward(x3, w3, b3))
    ref3 = x3 @ w3.T + b3
    rel3 = jnp.max(jnp.abs(out3 - ref3)) / jnp.max(jnp.abs(ref3))
    assert out3.shape == (M3, N3)
    assert rel3 < 1e-3, f"test 3 mismatch, rel_err={rel3}"

    print("KERNEL_OK")
</pallas_src>

<mosaic_0001>
module attributes {stable_mosaic.version = 11 : i64} {
  func.func @_linear_kernel(%arg0: i32, %arg1: i32, %arg2: i32, %arg3: memref<8x32xf32, #tpu.memory_space<vmem>>, %arg4: memref<32x128xf32, #tpu.memory_space<vmem>>, %arg5: memref<1x128xf32, #tpu.memory_space<vmem>>, %arg6: memref<8x128xf32, #tpu.memory_space<vmem>>, %arg7: memref<8x128xf32, #tpu.memory_space<vmem>>) attributes {dimension_semantics = [#tpu.dimension_semantics<parallel>, #tpu.dimension_semantics<parallel>, #tpu.dimension_semantics<arbitrary>], iteration_bounds = array<i64: 1, 1, 1>, scalar_prefetch = 0 : i64, scratch_operands = 1 : i64, tpu.core_type = #tpu.core_type<tc>, window_params = [{transform_indices = @transform_0, window_bounds = array<i64: 8, 32>}, {transform_indices = @transform_1, window_bounds = array<i64: 32, 128>}, {transform_indices = @transform_2, window_bounds = array<i64: 1, 128>}, {transform_indices = @transform_3, window_bounds = array<i64: 8, 128>}]} {
    %c0_i32 = arith.constant 0 : i32
    %0 = arith.cmpi eq, %arg2, %c0_i32 : i32
    %1 = arith.extui %0 : i1 to i32
    %c0_i32_0 = arith.constant 0 : i32
    %2 = arith.cmpi ne, %1, %c0_i32_0 : i32
    scf.if %2 {
      %c0_10 = arith.constant 0 : index
      %c0_11 = arith.constant 0 : index
      %12 = vector.load %arg5[%c0_10, %c0_11] : memref<1x128xf32, #tpu.memory_space<vmem>>, vector<1x128xf32>
      %13 = vector.shape_cast %12 : vector<1x128xf32> to vector<1x128xf32>
      %14 = vector.broadcast %13 : vector<1x128xf32> to vector<8x128xf32>
      %c0_12 = arith.constant 0 : index
      %c0_13 = arith.constant 0 : index
      %15 = vector.load %arg7[%c0_12, %c0_13] : memref<8x128xf32, #tpu.memory_space<vmem>>, vector<8x128xf32>
      tpu.vector_store %arg7[%c0_12, %c0_13], %14 {strides = array<i32>} : memref<8x128xf32, #tpu.memory_space<vmem>>, vector<8x128xf32>,
    } else {
    }
    %c0 = arith.constant 0 : index
    %c0_1 = arith.constant 0 : index
    %3 = vector.load %arg7[%c0, %c0_1] : memref<8x128xf32, #tpu.memory_space<vmem>>, vector<8x128xf32>
    %c0_2 = arith.constant 0 : index
    %c0_3 = arith.constant 0 : index
    %4 = vector.load %arg3[%c0_2, %c0_3] : memref<8x32xf32, #tpu.memory_space<vmem>>, vector<8x32xf32>
    %c0_4 = arith.constant 0 : index
    %c0_5 = arith.constant 0 : index
    %5 = vector.load %arg4[%c0_4, %c0_5] : memref<32x128xf32, #tpu.memory_space<vmem>>, vector<32x128xf32>
    %cst = arith.constant dense<0.000000e+00> : vector<8x128xf32>
    %6 = tpu.matmul %4, %5, %cst {dimension_numbers = #tpu.dot_dimension_numbers<[1], [0], [0], [1], [0, 0, 1, 1], [], []>} : vector<8x32xf32>, vector<32x128xf32>, vector<8x128xf32> -> vector<8x128xf32>
    %7 = arith.addf %3, %6 : vector<8x128xf32>
    %c0_6 = arith.constant 0 : index
    %c0_7 = arith.constant 0 : index
    %8 = vector.load %arg7[%c0_6, %c0_7] : memref<8x128xf32, #tpu.memory_space<vmem>>, vector<8x128xf32>
    tpu.vector_store %arg7[%c0_6, %c0_7], %7 {strides = array<i32>} : memref<8x128xf32, #tpu.memory_space<vmem>>, vector<8x128xf32>,
    %c0_i32_8 = arith.constant 0 : i32
    %9 = arith.cmpi eq, %arg2, %c0_i32_8 : i32
    %10 = arith.extui %9 : i1 to i32
    %c0_i32_9 = arith.constant 0 : i32
    %11 = arith.cmpi ne, %10, %c0_i32_9 : i32
    scf.if %11 {
      %c0_10 = arith.constant 0 : index
      %c0_11 = arith.constant 0 : index
      %12 = vector.load %arg7[%c0_10, %c0_11] : memref<8x128xf32, #tpu.memory_space<vmem>>, vector<8x128xf32>
      %c0_12 = arith.constant 0 : index
      %c0_13 = arith.constant 0 : index
      %13 = vector.load %arg6[%c0_12, %c0_13] : memref<8x128xf32, #tpu.memory_space<vmem>>, vector<8x128xf32>
      tpu.vector_store %arg6[%c0_12, %c0_13], %12 {strides = array<i32>} : memref<8x128xf32, #tpu.memory_space<vmem>>, vector<8x128xf32>,
    } else {
    }
    return
  }
  func.func @transform_0(%arg0: i32, %arg1: i32, %arg2: i32) -> (i32, i32) {
    %c0_i32 = arith.constant 0 : i32
    return %arg0, %arg2 : i32, i32
  }
  func.func @transform_1(%arg0: i32, %arg1: i32, %arg2: i32) -> (i32, i32) {
    %c0_i32 = arith.constant 0 : i32
    return %arg2, %arg1 : i32, i32
  }
  func.func @transform_2(%arg0: i32, %arg1: i32, %arg2: i32) -> (i32, i32) {
    %c0_i32 = arith.constant 0 : i32
    %c0_i32_0 = arith.constant 0 : i32
    return %c0_i32, %arg1 : i32, i32
  }
  func.func @transform_3(%arg0: i32, %arg1: i32, %arg2: i32) -> (i32, i32) {
    %c0_i32 = arith.constant 0 : i32
    return %arg0, %arg1 : i32, i32
  }
}

</mosaic_0001>

<llo_original>
// kernel: tpu_custom_call.1
$region0: #{tpu_custom_call.1}
  #allocation0 [shape = 'u32[]', space=smem, size = 0x4, offset = 0x4, fixed_abs, tag = 'smem constant byte address 0x4 - core index']
  #allocation1 [shape = 'u32[144,128]{1,0:T(1,128)}', space=vmem, size = 0x12000, scoped, tag = 'internal scratch']
  #allocation2 [shape = 'f32[8,128]{1,0:T(8,128)}', space=vmem, size = 0x1000, scoped, tag = 'scratch operand']
  %s0 = inlined_call_operand.hbm [shape: f32[8,32], index: 0, kind: input, shape index: {}]
  %s1 = inlined_call_operand.hbm [shape: f32[32,128], index: 1, kind: input, shape index: {}]
  %s2 = inlined_call_operand.vmem [shape: f32[1,128], index: 2, kind: input, shape index: {}]
  %s3 = inlined_call_operand.hbm [shape: f32[8,128], index: 3, kind: output, shape index: {}]
  %s4 = sld [smem:[#allocation0]]
  $region38: #{tpu_custom_call.1} parent=0
    _
  %s6 = ssub.s32 1, %s4
  %s7 = scalar_select 0, %s6, %s4
  $region1: #{tpu_custom_call.1} parent=0
    #allocation3 [shape = 'u8[4096]{0}', space=vmem, size = 0x1000, scoped, tag = 'input window, operand 0, single buffered']
    #allocation4 [shape = 's32[1]{0}', space=sflag, size = 0x4, scoped, tag = 'scoped memory for tpu_custom_call.1']
    #allocation5 [shape = 's32[1]{0}', space=sflag, size = 0x4, scoped, tag = 'scoped memory for tpu_custom_call.1']
    #allocation6 [shape = 'u8[16384]{0}', space=vmem, size = 0x4000, scoped, tag = 'input window, operand 1, single buffered']
    #allocation7 [shape = 's32[1]{0}', space=sflag, size = 0x4, scoped, tag = 'scoped memory for tpu_custom_call.1']
    #allocation8 [shape = 'u8[4096]{0}', space=vmem, size = 0x1000, scoped, tag = 'output window, operand 0, single buffered']
    %8 = vsyncpa [#allocation4], 0
    %9 = vsyncpa [#allocation7], 0
    %10 = vsyncpa [#allocation5], 0
    // Predicated region
    $region2: #{tpu_custom_call.1} parent=1 // pred_check
      _
    $region3: #{tpu_custom_call.1} parent=1 // pred_check_branch
      %12 = sbr.rel (0) target = $region5
    $region4: #{tpu_custom_call.1} parent=1 // pred_region
      %s14 = ssub.s32 128, 128
      %15 = vsyncadd [#allocation4], %s14
      %s17 = sshll.u32 [#allocation3], 4
      %s18 = int_to_ptr.vmem [resolvable:$true] %s17
      %20 = dma.hbm_to_vmem [thread:$0]  %s0, 128, %s18, [#allocation4]
    $region5: #{tpu_custom_call.1} parent=1 // pred_fallthru
      _
    // Predicated region
    $region6: #{tpu_custom_call.1} parent=1 // pred_check
      _
    $region7: #{tpu_custom_call.1} parent=1 // pred_check_branch
      %22 = sbr.rel (0) target = $region9
    $region8: #{tpu_custom_call.1} parent=1 // pred_region
      %s24 = ssub.s32 512, 512
      %25 = vsyncadd [#allocation7], %s24
      %s26 = sshll.u32 [#allocation6], 4
      %s27 = int_to_ptr.vmem [resolvable:$true] %s26
      %32 = dma.hbm_to_vmem [thread:$0]  %s1, 512, %s27, [#allocation7], 128, 128, 8
    $region9: #{tpu_custom_call.1} parent=1 // pred_fallthru
      _
    // Predicated region
    $region10: #{tpu_custom_call.1} parent=1 // pred_check
      _
    $region11: #{tpu_custom_call.1} parent=1 // pred_check_branch
      %34 = sbr.rel (0) target = $region13
    $region12: #{tpu_custom_call.1} parent=1 // pred_region
      _
    $region13: #{tpu_custom_call.1} parent=1 // pred_fallthru
      _
    // Predicated region
    $region14: #{tpu_custom_call.1} parent=1 // pred_check
      _
    $region15: #{tpu_custom_call.1} parent=1 // pred_check_branch
      %36 = sbr.rel (0) target = $region17
    $region16: #{tpu_custom_call.1} parent=1 // pred_region
      %37 = dma.done [#allocation4], 128
    $region17: #{tpu_custom_call.1} parent=1 // pred_fallthru
      _
    // Predicated region
    $region18: #{tpu_custom_call.1} parent=1 // pred_check
      _
    $region19: #{tpu_custom_call.1} parent=1 // pred_check_branch
      %39 = sbr.rel (0) target = $region21
    $region20: #{tpu_custom_call.1} parent=1 // pred_region
      %40 = dma.done [#allocation7], 512
    $region21: #{tpu_custom_call.1} parent=1 // pred_fallthru
      _
    %p41 = scmp.eq.s32.totalorder 0, 0
    // Predicated region
    $region22: #{tpu_custom_call.1} parent=1 // pred_check
      %p42 = pneg %p41
    $region23: #{tpu_custom_call.1} parent=1 // pred_check_branch
      %44 = sbr.rel (%p42) target = $region25
    $region24: #{tpu_custom_call.1} parent=1 // pred_region
      %v45 = vld [vmem:[%s2] sm:$0x1]
      %v47 = vlaneseq
      %v48 = vshrl.u32 %v47, 7
      %v49 = vsub.s32 0, %v48
      %v50 = vrot.slane %v45, %v49
      %52 = vst [vmem:[#allocation2] sm:$0xff] %v50
    $region25: #{tpu_custom_call.1} parent=1 // pred_fallthru
      _
    %v53 = vld [vmem:[#allocation2] sm:$0xff]
    %v54 = vld [vmem:[#allocation3] sm:$0xff]
    %v55 = vld [vmem:[#allocation6] sm:$0xff]
    %v56 = vld [vmem:[#allocation6 + $0x8] sm:$0xff]
    %v57 = vld [vmem:[#allocation6 + $0x10] sm:$0xff]
    %v58 = vld [vmem:[#allocation6 + $0x18] sm:$0xff]
    %vm59 = vcmask 261120
    %v61 = vsel %vm59, %v54, 0
    %63 = vmatprep.subr.mxu0 0.0
    %64 = vmatpush1.msra.mxu0 %v55
    %65 = vmatprep.subr.mxu0 0.0
    %66 = vmatpush1.msra.mxu0 %v56
    %67 = vmatprep.subr.mxu0 0.0
    %68 = vmatpush1.msra.mxu0 %v57
    %69 = vmatprep.subr.mxu0 0.0
    %70 = vmatpush1.msra.mxu0 %v58
    %71 = vmatprep.subr.mxu0 0.0
    %72 = vmatpush1.msra.mxu0 0.0
    %73 = vmatprep.subr.mxu0 0.0
    %74 = vmatpush1.msra.mxu0 0.0
    %75 = vmatprep.subr.mxu0 0.0
    %76 = vmatpush1.msra.mxu0 0.0
    %77 = vmatprep.subr.mxu0 0.0
    %78 = vmatpush1.msra.mxu0 0.0
    %79 = vmatprep.subr.mxu0 0.0
    %80 = vmatpush1.msra.mxu0 0.0
    %81 = vmatprep.subr.mxu0 0.0
    %82 = vmatpush1.msra.mxu0 0.0
    %83 = vmatprep.subr.mxu0 0.0
    %84 = vmatpush1.msra.mxu0 0.0
    %85 = vmatprep.subr.mxu0 0.0
    %86 = vmatpush1.msra.mxu0 0.0
    %87 = vmatprep.subr.mxu0 0.0
    %88 = vmatpush1.msra.mxu0 0.0
    %89 = vmatprep.subr.mxu0 0.0
    %90 = vmatpush1.msra.mxu0 0.0
    %91 = vmatprep.subr.mxu0 0.0
    %92 = vmatpush1.msra.mxu0 0.0
    %93 = vmatprep.subr.mxu0 0.0
    %94 = vmatpush1.msra.mxu0 0.0
    %95 = vmatprep.subr.mxu0 0.0
    %96 = vmatpush1.msra.mxu0 0.0
    %97 = vmatprep.subr.mxu0 0.0
    %98 = vmatpush1.msra.mxu0 0.0
    %99 = vmatprep.subr.mxu0 0.0
    %100 = vmatpush1.msra.mxu0 0.0
    %101 = vmatprep.subr.mxu0 0.0
    %102 = vmatpush1.msra.mxu0 0.0
    %103 = vmatprep.subr.mxu0 0.0
    %104 = vmatpush1.msra.mxu0 0.0
    %105 = vmatprep.subr.mxu0 0.0
    %106 = vmatpush1.msra.mxu0 0.0
    %107 = vmatprep.subr.mxu0 0.0
    %108 = vmatpush1.msra.mxu0 0.0
    %109 = vmatprep.subr.mxu0 0.0
    %110 = vmatpush1.msra.mxu0 0.0
    %111 = vmatprep.subr.mxu0 0.0
    %112 = vmatpush1.msra.mxu0 0.0
    %113 = vmatprep.subr.mxu0 0.0
    %114 = vmatpush1.msra.mxu0 0.0
    %115 = vmatprep.subr.mxu0 0.0
    %116 = vmatpush1.msra.mxu0 0.0
    %117 = vmatprep.subr.mxu0 0.0
    %118 = vmatpush1.msra.mxu0 0.0
    %119 = vmatprep.subr.mxu0 0.0
    %120 = vmatpush1.msra.mxu0 0.0
    %121 = vmatprep.subr.mxu0 0.0
    %122 = vmatpush1.msra.mxu0 0.0
    %123 = vmatprep.subr.mxu0 0.0
    %124 = vmatpush1.msra.mxu0 0.0
    %125 = vmatprep.subr.mxu0 0.0
    %126 = vmatpush1.msra.mxu0 0.0
    %127 = vmatprep.mubr.f32.mxu0 0.0
    %128 = vmatmul.mubr.f32.gmra.mrb[0].mxu0 %v61
    %v129 = vpop.f32.mrb[0].mxu0
    %v130 = vadd.f32 0.0, %v129
    %v131 = vpop.f32.mrb[0].mxu0
    %132 = vdwg.mxu0
    %v133 = vadd.f32 %v53, %v130
    %134 = vst [vmem:[#allocation2] sm:$0xff] %v133
    // Predicated region
    $region26: #{tpu_custom_call.1} parent=1 // pred_check
      %p135 = pneg %p41
    $region27: #{tpu_custom_call.1} parent=1 // pred_check_branch
      %137 = sbr.rel (%p135) target = $region29
    $region28: #{tpu_custom_call.1} parent=1 // pred_region
      %v138 = vld [vmem:[#allocation2] sm:$0xff]
      %139 = vst [vmem:[#allocation8] sm:$0xff] %v138
    $region29: #{tpu_custom_call.1} parent=1 // pred_fallthru
      _
    // Predicated region
    $region30: #{tpu_custom_call.1} parent=1 // pred_check
      _
    $region31: #{tpu_custom_call.1} parent=1 // pred_check_branch
      %141 = sbr.rel (0) target = $region33
    $region32: #{tpu_custom_call.1} parent=1 // pred_region
      %s143 = ssub.s32 128, 128
      %144 = vsyncadd [#allocation5], %s143
      %s146 = sshll.u32 [#allocation8], 4
      %s147 = int_to_ptr.vmem [resolvable:$true] %s146
      %149 = dma.vmem_to_hbm [thread:$0]  %s147, 128, %s3, [#allocation5]
    $region33: #{tpu_custom_call.1} parent=1 // pred_fallthru
      _
    // Predicated region
    $region34: #{tpu_custom_call.1} parent=1 // pred_check
      _
    $region35: #{tpu_custom_call.1} parent=1 // pred_check_branch
      %151 = sbr.rel (0) target = $region37
    $region36: #{tpu_custom_call.1} parent=1 // pred_region
      %152 = dma.done [#allocation5], 128
    $region37: #{tpu_custom_call.1} parent=1 // pred_fallthru
      _
    %153 = vsyncpa [#allocation4], 1
    %154 = vsyncpa [#allocation7], 1
    %155 = vsyncpa [#allocation5], 1

</llo_original>
